<compile_context>
chip_gen: v6e
topology: v6e:2x2x1
jax: 0.10.0
libtpu: 0.0.40
codegen_flags: <defaults>
</compile_context>

<pallas_src>
import jax
import jax.numpy as jnp
from jax.experimental import pallas as pl
from jax.experimental.pallas import tpu as pltpu


def _round_up(x: int, m: int) -> int:
    return ((x + m - 1) // m) * m


def resnet_kernel(z_ref, w1_ref, b1_ref, w2_ref, b2_ref, o_ref):
    # Residual block on one (TB, Dp) batch tile: o = z + Linear2(relu(Linear1(z)))
    z = z_ref[...]                                                   # (TB, Dp) f32

    # Matmuls in bf16 on the MXU, f32 accumulation.
    h = jnp.dot(z.astype(jnp.bfloat16),
                w1_ref[...].astype(jnp.bfloat16),
                preferred_element_type=jnp.float32)                  # (TB, Hp)
    h = jnp.maximum(h + b1_ref[...], 0.0)                            # bias + ReLU in f32 (VPU)

    y = jnp.dot(h.astype(jnp.bfloat16),
                w2_ref[...].astype(jnp.bfloat16),
                preferred_element_type=jnp.float32)                  # (TB, Dp)
    y = y + b2_ref[...]                                              # bias in f32

    o_ref[...] = (z + y).astype(o_ref.dtype)                         # residual add, lane-dense store


def resnet_forward(z, w1, b1, w2, b2, *, block_b: int = 256,
                   vmem_limit_bytes: int = 48 * 1024 * 1024):
    """z: (B, D); w1: (D, H); b1: (1, H); w2: (H, D); b2: (1, D)."""
    B, D = z.shape
    H = w1.shape[1]

    # Lane-dense padding: feature dims to multiples of 128 (zero padding keeps
    # the math identical in the valid region since padded weight rows/cols and
    # padded z columns are zero, and ReLU(0)=0).
    Dp = _round_up(D, 128)
    Hp = _round_up(H, 128)

    # Batch tile: multiple of 8 (sublane), capped by block_b (sized so that the
    # double-buffered (TB, Dp) in/out tiles + resident weights stay well under
    # v7x's 64 MiB VMEM even for larger D/H).
    TB = min(block_b, _round_up(B, 8))
    Bp = _round_up(B, TB)

    f32 = jnp.float32
    zp = jnp.pad(z.astype(f32), ((0, Bp - B), (0, Dp - D)))
    w1p = jnp.pad(w1.astype(f32), ((0, Dp - D), (0, Hp - H)))
    b1p = jnp.pad(b1.astype(f32), ((0, 0), (0, Hp - H)))
    w2p = jnp.pad(w2.astype(f32), ((0, Hp - H), (0, Dp - D)))
    b2p = jnp.pad(b2.astype(f32), ((0, 0), (0, Dp - D)))

    grid = (Bp // TB,)

    bytes_accessed = 4 * (zp.size + w1p.size + b1p.size + w2p.size + b2p.size + Bp * Dp)
    cost = pl.CostEstimate(
        flops=2 * Bp * Dp * Hp + 2 * Bp * Hp * Dp,
        transcendentals=0,
        bytes_accessed=bytes_accessed,
    )

    out_padded = pl.pallas_call(
        resnet_kernel,
        out_shape=jax.ShapeDtypeStruct((Bp, Dp), z.dtype),
        grid=grid,
        in_specs=[
            pl.BlockSpec((TB, Dp), lambda i: (i, 0)),   # z tile, pipelined over batch
            pl.BlockSpec((Dp, Hp), lambda i: (0, 0)),   # W1 resident in VMEM
            pl.BlockSpec((1, Hp), lambda i: (0, 0)),    # b1 resident
            pl.BlockSpec((Hp, Dp), lambda i: (0, 0)),   # W2 resident
            pl.BlockSpec((1, Dp), lambda i: (0, 0)),    # b2 resident
        ],
        out_specs=pl.BlockSpec((TB, Dp), lambda i: (i, 0)),
        compiler_params=pltpu.CompilerParams(
            dimension_semantics=("parallel",),
            vmem_limit_bytes=vmem_limit_bytes,
        ),
        cost_estimate=cost,
    )(zp, w1p, b1p, w2p, b2p)

    # TODO(synk): if D/H ever grow so large that W1/W2 no longer fit resident
    # in VMEM, add a K-reduction grid axis ("arbitrary") with an f32 VMEM
    # accumulator and pl.when init/finalize instead of whole-weight blocks.
    return out_padded[:B, :D]


if __name__ == "__main__":
    # Small logical shapes consistent with the module (batch of feature vectors);
    # the wrapper pads them to lane-dense hardware tiles internally.
    B, D, H = 8, 32, 64  # batch, feature dim, hidden dim of inner MLP

    key = jax.random.PRNGKey(0)
    k_z, k_w1, k_b1, k_w2, k_b2 = jax.random.split(key, 5)

    z = jax.random.normal(k_z, (B, D), dtype=jnp.float32)
    w1 = jax.random.normal(k_w1, (D, H), dtype=jnp.float32) * 0.1
    b1 = jax.random.normal(k_b1, (1, H), dtype=jnp.float32) * 0.1
    w2 = jax.random.normal(k_w2, (H, D), dtype=jnp.float32) * 0.1
    b2 = jax.random.normal(k_b2, (1, D), dtype=jnp.float32) * 0.1

    out = resnet_forward(z, w1, b1, w2, b2)
    jax.block_until_ready(out)

    # Reference in plain JAX (same math as PyTorch z + module(z)).
    # Tolerance accounts for bf16 MXU inputs (f32 accumulation) in the kernel.
    ref = z + (jnp.maximum(z @ w1 + b1, 0.0) @ w2 + b2)
    assert out.shape == (B, D)
    assert jnp.allclose(out, ref, atol=2e-2, rtol=2e-2), float(jnp.max(jnp.abs(out - ref)))

    print("KERNEL_OK")
</pallas_src>

<mosaic_0001>
module attributes {stable_mosaic.version = 11 : i64} {
  func.func @resnet_kernel(%arg0: i32, %arg1: memref<8x128xf32, #tpu.memory_space<vmem>>, %arg2: memref<128x128xf32, #tpu.memory_space<vmem>>, %arg3: memref<1x128xf32, #tpu.memory_space<vmem>>, %arg4: memref<128x128xf32, #tpu.memory_space<vmem>>, %arg5: memref<1x128xf32, #tpu.memory_space<vmem>>, %arg6: memref<8x128xf32, #tpu.memory_space<vmem>>) attributes {dimension_semantics = [#tpu.dimension_semantics<parallel>], iteration_bounds = array<i64: 1>, scalar_prefetch = 0 : i64, scratch_operands = 0 : i64, tpu.core_type = #tpu.core_type<tc>, window_params = [{transform_indices = @transform_0, window_bounds = array<i64: 8, 128>}, {pipeline_mode = #tpu.pipeline_mode<synchronous>, transform_indices = @transform_1, window_bounds = array<i64: 128, 128>}, {pipeline_mode = #tpu.pipeline_mode<synchronous>, transform_indices = @transform_2, window_bounds = array<i64: 1, 128>}, {pipeline_mode = #tpu.pipeline_mode<synchronous>, transform_indices = @transform_3, window_bounds = array<i64: 128, 128>}, {pipeline_mode = #tpu.pipeline_mode<synchronous>, transform_indices = @transform_4, window_bounds = array<i64: 1, 128>}, {transform_indices = @transform_5, window_bounds = array<i64: 8, 128>}]} {
    %c0 = arith.constant 0 : index
    %c0_0 = arith.constant 0 : index
    %0 = vector.load %arg1[%c0, %c0_0] : memref<8x128xf32, #tpu.memory_space<vmem>>, vector<8x128xf32>
    %1 = arith.truncf %0 : vector<8x128xf32> to vector<8x128xbf16>
    %c0_1 = arith.constant 0 : index
    %c0_2 = arith.constant 0 : index
    %2 = vector.load %arg2[%c0_1, %c0_2] : memref<128x128xf32, #tpu.memory_space<vmem>>, vector<128x128xf32>
    %3 = arith.truncf %2 : vector<128x128xf32> to vector<128x128xbf16>
    %cst = arith.constant dense<0.000000e+00> : vector<8x128xf32>
    %4 = tpu.matmul %1, %3, %cst {dimension_numbers = #tpu.dot_dimension_numbers<[1], [0], [0], [1], [0, 0, 1, 1], [], []>} : vector<8x128xbf16>, vector<128x128xbf16>, vector<8x128xf32> -> vector<8x128xf32>
    %c0_3 = arith.constant 0 : index
    %c0_4 = arith.constant 0 : index
    %5 = vector.load %arg3[%c0_3, %c0_4] : memref<1x128xf32, #tpu.memory_space<vmem>>, vector<1x128xf32>
    %6 = vector.broadcast %5 : vector<1x128xf32> to vector<8x128xf32>
    %7 = arith.addf %4, %6 : vector<8x128xf32>
    %cst_5 = arith.constant 0.000000e+00 : f32
    %8 = vector.broadcast %cst_5 : f32 to vector<8x128xf32>
    %9 = arith.maximumf %7, %8 : vector<8x128xf32>
    %10 = arith.truncf %9 : vector<8x128xf32> to vector<8x128xbf16>
    %c0_6 = arith.constant 0 : index
    %c0_7 = arith.constant 0 : index
    %11 = vector.load %arg4[%c0_6, %c0_7] : memref<128x128xf32, #tpu.memory_space<vmem>>, vector<128x128xf32>
    %12 = arith.truncf %11 : vector<128x128xf32> to vector<128x128xbf16>
    %cst_8 = arith.constant dense<0.000000e+00> : vector<8x128xf32>
    %13 = tpu.matmul %10, %12, %cst_8 {dimension_numbers = #tpu.dot_dimension_numbers<[1], [0], [0], [1], [0, 0, 1, 1], [], []>} : vector<8x128xbf16>, vector<128x128xbf16>, vector<8x128xf32> -> vector<8x128xf32>
    %c0_9 = arith.constant 0 : index
    %c0_10 = arith.constant 0 : index
    %14 = vector.load %arg5[%c0_9, %c0_10] : memref<1x128xf32, #tpu.memory_space<vmem>>, vector<1x128xf32>
    %15 = vector.broadcast %14 : vector<1x128xf32> to vector<8x128xf32>
    %16 = arith.addf %13, %15 : vector<8x128xf32>
    %17 = arith.addf %0, %16 : vector<8x128xf32>
    %c0_11 = arith.constant 0 : index
    %c0_12 = arith.constant 0 : index
    %18 = vector.load %arg6[%c0_11, %c0_12] : memref<8x128xf32, #tpu.memory_space<vmem>>, vector<8x128xf32>
    tpu.vector_store %arg6[%c0_11, %c0_12], %17 {strides = array<i32>} : memref<8x128xf32, #tpu.memory_space<vmem>>, vector<8x128xf32>,
    return
  }
  func.func @transform_0(%arg0: i32) -> (i32, i32) {
    %c0_i32 = arith.constant 0 : i32
    %c0_i32_0 = arith.constant 0 : i32
    return %arg0, %c0_i32 : i32, i32
  }
  func.func @transform_1(%arg0: i32) -> (i32, i32) {
    %c0_i32 = arith.constant 0 : i32
    %c0_i32_0 = arith.constant 0 : i32
    %c0_i32_1 = arith.constant 0 : i32
    return %c0_i32, %c0_i32_0 : i32, i32
  }
  func.func @transform_2(%arg0: i32) -> (i32, i32) {
    %c0_i32 = arith.constant 0 : i32
    %c0_i32_0 = arith.constant 0 : i32
    %c0_i32_1 = arith.constant 0 : i32
    return %c0_i32, %c0_i32_0 : i32, i32
  }
  func.func @transform_3(%arg0: i32) -> (i32, i32) {
    %c0_i32 = arith.constant 0 : i32
    %c0_i32_0 = arith.constant 0 : i32
    %c0_i32_1 = arith.constant 0 : i32
    return %c0_i32, %c0_i32_0 : i32, i32
  }
  func.func @transform_4(%arg0: i32) -> (i32, i32) {
    %c0_i32 = arith.constant 0 : i32
    %c0_i32_0 = arith.constant 0 : i32
    %c0_i32_1 = arith.constant 0 : i32
    return %c0_i32, %c0_i32_0 : i32, i32
  }
  func.func @transform_5(%arg0: i32) -> (i32, i32) {
    %c0_i32 = arith.constant 0 : i32
    %c0_i32_0 = arith.constant 0 : i32
    return %arg0, %c0_i32 : i32, i32
  }
}

</mosaic_0001>

<llo_original>
// kernel: tpu_custom_call.1
$region0: #{tpu_custom_call.1}
  #allocation0 [shape = 'u32[]', space=smem, size = 0x4, offset = 0x4, fixed_abs, tag = 'smem constant byte address 0x4 - core index']
  #allocation1 [shape = 'u32[144,128]{1,0:T(1,128)}', space=vmem, size = 0x12000, scoped, tag = 'internal scratch']
  %s0 = inlined_call_operand.hbm [shape: f32[8,128], index: 0, kind: input, shape index: {}]
  %s1 = inlined_call_operand.hbm [shape: f32[128,128], index: 1, kind: input, shape index: {}]
  %s2 = inlined_call_operand.vmem [shape: f32[1,128], index: 2, kind: input, shape index: {}]
  %s3 = inlined_call_operand.hbm [shape: f32[128,128], index: 3, kind: input, shape index: {}]
  %s4 = inlined_call_operand.vmem [shape: f32[1,128], index: 4, kind: input, shape index: {}]
  %s5 = inlined_call_operand.hbm [shape: f32[8,128], index: 5, kind: output, shape index: {}]
  %s6 = sld [smem:[#allocation0]]
  $region42: #{tpu_custom_call.1} parent=0
    _
  %s8 = ssub.s32 1, %s6
  %s9 = scalar_select 0, %s8, %s6
  $region1: #{tpu_custom_call.1} parent=0
    #allocation2 [shape = 'u8[4096]{0}', space=vmem, size = 0x1000, scoped, tag = 'input window, operand 0, single buffered']
    #allocation3 [shape = 's32[1]{0}', space=sflag, size = 0x4, scoped, tag = 'scoped memory for tpu_custom_call.1']
    #allocation4 [shape = 's32[1]{0}', space=sflag, size = 0x4, scoped, tag = 'scoped memory for tpu_custom_call.1']
    #allocation5 [shape = 'u8[65536]{0}', space=vmem, size = 0x10000, scoped, tag = 'input window, operand 1, single buffered']
    #allocation6 [shape = 's32[1]{0}', space=sflag, size = 0x4, scoped, tag = 'scoped memory for tpu_custom_call.1']
    #allocation7 [shape = 'u8[65536]{0}', space=vmem, size = 0x10000, scoped, tag = 'input window, operand 3, single buffered']
    #allocation8 [shape = 'u8[4096]{0}', space=vmem, size = 0x1000, scoped, tag = 'output window, operand 0, single buffered']
    %10 = vsyncpa [#allocation3], 0
    %11 = vsyncpa [#allocation6], 0
    %12 = vsyncpa [#allocation4], 0
    // Predicated region
    $region2: #{tpu_custom_call.1} parent=1 // pred_check
      _
    $region3: #{tpu_custom_call.1} parent=1 // pred_check_branch
      %14 = sbr.rel (0) target = $region5
    $region4: #{tpu_custom_call.1} parent=1 // pred_region
      %s16 = ssub.s32 128, 128
      %17 = vsyncadd [#allocation3], %s16
      %s19 = sshll.u32 [#allocation2], 4
      %s20 = int_to_ptr.vmem [resolvable:$true] %s19
      %22 = dma.hbm_to_vmem [thread:$0]  %s0, 128, %s20, [#allocation3]
    $region5: #{tpu_custom_call.1} parent=1 // pred_fallthru
      _
    // Predicated region
    $region6: #{tpu_custom_call.1} parent=1 // pred_check
      _
    $region7: #{tpu_custom_call.1} parent=1 // pred_check_branch
      %24 = sbr.rel (0) target = $region9
    $region8: #{tpu_custom_call.1} parent=1 // pred_region
      %s26 = ssub.s32 2048, 2048
      %27 = vsyncadd [#allocation6], %s26
      %s28 = sshll.u32 [#allocation5], 4
      %s29 = int_to_ptr.vmem [resolvable:$true] %s28
      %34 = dma.hbm_to_vmem [thread:$0]  %s1, 2048, %s29, [#allocation6], 128, 128, 8
    $region9: #{tpu_custom_call.1} parent=1 // pred_fallthru
      _
    // Predicated region
    $region10: #{tpu_custom_call.1} parent=1 // pred_check
      _
    $region11: #{tpu_custom_call.1} parent=1 // pred_check_branch
      %36 = sbr.rel (0) target = $region13
    $region12: #{tpu_custom_call.1} parent=1 // pred_region
      _
    $region13: #{tpu_custom_call.1} parent=1 // pred_fallthru
      _
    // Predicated region
    $region14: #{tpu_custom_call.1} parent=1 // pred_check
      _
    $region15: #{tpu_custom_call.1} parent=1 // pred_check_branch
      %38 = sbr.rel (0) target = $region17
    $region16: #{tpu_custom_call.1} parent=1 // pred_region
      %s40 = ssub.s32 2048, 2048
      %41 = vsyncadd [#allocation6], %s40
      %s42 = sshll.u32 [#allocation7], 4
      %s43 = int_to_ptr.vmem [resolvable:$true] %s42
      %48 = dma.hbm_to_vmem [thread:$0]  %s3, 2048, %s43, [#allocation6], 128, 128, 8
    $region17: #{tpu_custom_call.1} parent=1 // pred_fallthru
      _
    // Predicated region
    $region18: #{tpu_custom_call.1} parent=1 // pred_check
      _
    $region19: #{tpu_custom_call.1} parent=1 // pred_check_branch
      %50 = sbr.rel (0) target = $region21
    $region20: #{tpu_custom_call.1} parent=1 // pred_region
      _
    $region21: #{tpu_custom_call.1} parent=1 // pred_fallthru
      _
    // Predicated region
    $region22: #{tpu_custom_call.1} parent=1 // pred_check
      _
    $region23: #{tpu_custom_call.1} parent=1 // pred_check_branch
      %52 = sbr.rel (0) target = $region25
    $region24: #{tpu_custom_call.1} parent=1 // pred_region
      %53 = dma.done [#allocation3], 128
    $region25: #{tpu_custom_call.1} parent=1 // pred_fallthru
      _
    // Predicated region
    $region26: #{tpu_custom_call.1} parent=1 // pred_check
      _
    $region27: #{tpu_custom_call.1} parent=1 // pred_check_branch
      %55 = sbr.rel (0) target = $region29
    $region28: #{tpu_custom_call.1} parent=1 // pred_region
      %56 = dma.done [#allocation6], 2048
    $region29: #{tpu_custom_call.1} parent=1 // pred_fallthru
      _
    // Predicated region
    $region30: #{tpu_custom_call.1} parent=1 // pred_check
      _
    $region31: #{tpu_custom_call.1} parent=1 // pred_check_branch
      %58 = sbr.rel (0) target = $region33
    $region32: #{tpu_custom_call.1} parent=1 // pred_region
      %59 = dma.done [#allocation6], 2048
    $region33: #{tpu_custom_call.1} parent=1 // pred_fallthru
      _
    %v61 = vld [vmem:[#allocation2] sm:$0xff]
    %v62 = vpack.c.bf16 %v61, %v61
    %v63 = vld [vmem:[#allocation5] sm:$0xff]
    %v64 = vld [vmem:[#allocation5 + $0x8] sm:$0xff]
    %v65 = vld [vmem:[#allocation5 + $0x10] sm:$0xff]
    %v66 = vld [vmem:[#allocation5 + $0x18] sm:$0xff]
    %v67 = vld [vmem:[#allocation5 + $0x20] sm:$0xff]
    %v68 = vld [vmem:[#allocation5 + $0x28] sm:$0xff]
    %v69 = vld [vmem:[#allocation5 + $0x30] sm:$0xff]
    %v70 = vld [vmem:[#allocation5 + $0x38] sm:$0xff]
    %v71 = vld [vmem:[#allocation5 + $0x40] sm:$0xff]
    %v72 = vld [vmem:[#allocation5 + $0x48] sm:$0xff]
    %v73 = vld [vmem:[#allocation5 + $0x50] sm:$0xff]
    %v74 = vld [vmem:[#allocation5 + $0x58] sm:$0xff]
    %v75 = vld [vmem:[#allocation5 + $0x60] sm:$0xff]
    %v76 = vld [vmem:[#allocation5 + $0x68] sm:$0xff]
    %v77 = vld [vmem:[#allocation5 + $0x70] sm:$0xff]
    %v78 = vld [vmem:[#allocation5 + $0x78] sm:$0xff]
    %v79 = vpack.c.bf16 %v64, %v63
    %v80 = vpack.c.bf16 %v66, %v65
    %v81 = vpack.c.bf16 %v68, %v67
    %v82 = vpack.c.bf16 %v70, %v69
    %v83 = vpack.c.bf16 %v72, %v71
    %v84 = vpack.c.bf16 %v74, %v73
    %v85 = vpack.c.bf16 %v76, %v75
    %v86 = vpack.c.bf16 %v78, %v77
    %v87 = vld [vmem:[%s2] sm:$0x1]
    %v89 = vlaneseq
    %v90 = vshrl.u32 %v89, 7
    %v91 = vsub.s32 0, %v90
    %v92 = vrot.slane %v87, %v91
    %94 = vmatprep.subr.bf16.mxu0 0
    %95 = vmatpush1.bf16.msra.mxu0 %v86
    %96 = vmatprep.subr.bf16.mxu0 0
    %97 = vmatpush1.bf16.msra.mxu0 %v85
    %98 = vmatprep.subr.bf16.mxu0 0
    %99 = vmatpush1.bf16.msra.mxu0 %v84
    %100 = vmatprep.subr.bf16.mxu0 0
    %101 = vmatpush1.bf16.msra.mxu0 %v83
    %102 = vmatprep.subr.bf16.mxu0 0
    %103 = vmatpush1.bf16.msra.mxu0 %v82
    %104 = vmatprep.subr.bf16.mxu0 0
    %105 = vmatpush1.bf16.msra.mxu0 %v81
    %106 = vmatprep.subr.bf16.mxu0 0
    %107 = vmatpush1.bf16.msra.mxu0 %v80
    %108 = vmatprep.subr.bf16.mxu0 0
    %109 = vmatpush1.bf16.msra.mxu0 %v79
    %110 = vmatprep.subr.bf16.mxu0 0
    %111 = vmatpush2.bf16.msra.mxu0 0
    %112 = vmatprep.subr.bf16.mxu0 0
    %113 = vmatpush2.bf16.msra.mxu0 0
    %114 = vmatprep.subr.bf16.mxu0 0
    %115 = vmatpush2.bf16.msra.mxu0 0
    %116 = vmatprep.subr.bf16.mxu0 0
    %117 = vmatpush2.bf16.msra.mxu0 0
    %118 = vmatprep.subr.bf16.mxu0 0
    %119 = vmatpush2.bf16.msra.mxu0 0
    %120 = vmatprep.subr.bf16.mxu0 0
    %121 = vmatpush2.bf16.msra.mxu0 0
    %122 = vmatprep.subr.bf16.mxu0 0
    %123 = vmatpush2.bf16.msra.mxu0 0
    %124 = vmatprep.subr.bf16.mxu0 0
    %125 = vmatpush2.bf16.msra.mxu0 0
    %126 = vmatprep.mubr.bf16.mxu0 0
    %127 = vmatmul.mubr.bf16.gmra.mxu0 %v62
    %v128 = vpop.f32.mrf.mxu0
    %v129 = vadd.f32 %v92, %v128
    %v130 = vpop.f32.mrf.mxu0
    %v131 = vpop.f32.mrf.mxu0
    %v132 = vpop.f32.mrf.mxu0
    %133 = vdwg.mxu0
    %v134 = vmax.f32 %v129, 0.0
    %v135 = vpack.c.bf16 %v134, %v134
    %v136 = vld [vmem:[#allocation7] sm:$0xff]
    %v137 = vld [vmem:[#allocation7 + $0x8] sm:$0xff]
    %v138 = vld [vmem:[#allocation7 + $0x10] sm:$0xff]
    %v139 = vld [vmem:[#allocation7 + $0x18] sm:$0xff]
    %v140 = vld [vmem:[#allocation7 + $0x20] sm:$0xff]
    %v141 = vld [vmem:[#allocation7 + $0x28] sm:$0xff]
    %v142 = vld [vmem:[#allocation7 + $0x30] sm:$0xff]
    %v143 = vld [vmem:[#allocation7 + $0x38] sm:$0xff]
    %v144 = vld [vmem:[#allocation7 + $0x40] sm:$0xff]
    %v145 = vld [vmem:[#allocation7 + $0x48] sm:$0xff]
    %v146 = vld [vmem:[#allocation7 + $0x50] sm:$0xff]
    %v147 = vld [vmem:[#allocation7 + $0x58] sm:$0xff]
    %v148 = vld [vmem:[#allocation7 + $0x60] sm:$0xff]
    %v149 = vld [vmem:[#allocation7 + $0x68] sm:$0xff]
    %v150 = vld [vmem:[#allocation7 + $0x70] sm:$0xff]
    %v151 = vld [vmem:[#allocation7 + $0x78] sm:$0xff]
    %v152 = vpack.c.bf16 %v137, %v136
    %v153 = vpack.c.bf16 %v139, %v138
    %v154 = vpack.c.bf16 %v141, %v140
    %v155 = vpack.c.bf16 %v143, %v142
    %v156 = vpack.c.bf16 %v145, %v144
    %v157 = vpack.c.bf16 %v147, %v146
    %v158 = vpack.c.bf16 %v149, %v148
    %v159 = vpack.c.bf16 %v151, %v150
    %v160 = vld [vmem:[%s4] sm:$0x1]
    %v162 = vlaneseq
    %v163 = vshrl.u32 %v162, 7
    %v164 = vsub.s32 0, %v163
    %v165 = vrot.slane %v160, %v164
    %167 = vmatprep.subr.bf16.mxu0 0
    %168 = vmatpush1.bf16.msra.mxu0 %v159
    %169 = vmatprep.subr.bf16.mxu0 0
    %170 = vmatpush1.bf16.msra.mxu0 %v158
    %171 = vmatprep.subr.bf16.mxu0 0
    %172 = vmatpush1.bf16.msra.mxu0 %v157
    %173 = vmatprep.subr.bf16.mxu0 0
    %174 = vmatpush1.bf16.msra.mxu0 %v156
    %175 = vmatprep.subr.bf16.mxu0 0
    %176 = vmatpush1.bf16.msra.mxu0 %v155
    %177 = vmatprep.subr.bf16.mxu0 0
    %178 = vmatpush1.bf16.msra.mxu0 %v154
    %179 = vmatprep.subr.bf16.mxu0 0
    %180 = vmatpush1.bf16.msra.mxu0 %v153
    %181 = vmatprep.subr.bf16.mxu0 0
    %182 = vmatpush1.bf16.msra.mxu0 %v152
    %183 = vmatprep.subr.bf16.mxu0 0
    %184 = vmatpush2.bf16.msra.mxu0 0
    %185 = vmatprep.subr.bf16.mxu0 0
    %186 = vmatpush2.bf16.msra.mxu0 0
    %187 = vmatprep.subr.bf16.mxu0 0
    %188 = vmatpush2.bf16.msra.mxu0 0
    %189 = vmatprep.subr.bf16.mxu0 0
    %190 = vmatpush2.bf16.msra.mxu0 0
    %191 = vmatprep.subr.bf16.mxu0 0
    %192 = vmatpush2.bf16.msra.mxu0 0
    %193 = vmatprep.subr.bf16.mxu0 0
    %194 = vmatpush2.bf16.msra.mxu0 0
    %195 = vmatprep.subr.bf16.mxu0 0
    %196 = vmatpush2.bf16.msra.mxu0 0
    %197 = vmatprep.subr.bf16.mxu0 0
    %198 = vmatpush2.bf16.msra.mxu0 0
    %199 = vmatprep.mubr.bf16.mxu0 0
    %200 = vmatmul.mubr.bf16.gmra.mxu0 %v135
    %v201 = vpop.f32.mrf.mxu0
    %v202 = vadd.f32 %v165, %v201
    %v203 = vpop.f32.mrf.mxu0
    %v204 = vpop.f32.mrf.mxu0
    %v205 = vpop.f32.mrf.mxu0
    %206 = vdwg.mxu0
    %v207 = vadd.f32 %v61, %v202
    %208 = vst [vmem:[#allocation8] sm:$0xff] %v207
    // Predicated region
    $region34: #{tpu_custom_call.1} parent=1 // pred_check
      _
    $region35: #{tpu_custom_call.1} parent=1 // pred_check_branch
      %210 = sbr.rel (0) target = $region37
    $region36: #{tpu_custom_call.1} parent=1 // pred_region
      %s212 = ssub.s32 128, 128
      %213 = vsyncadd [#allocation4], %s212
      %s215 = sshll.u32 [#allocation8], 4
      %s216 = int_to_ptr.vmem [resolvable:$true] %s215
      %218 = dma.vmem_to_hbm [thread:$0]  %s216, 128, %s5, [#allocation4]
    $region37: #{tpu_custom_call.1} parent=1 // pred_fallthru
      _
    // Predicated region
    $region38: #{tpu_custom_call.1} parent=1 // pred_check
      _
    $region39: #{tpu_custom_call.1} parent=1 // pred_check_branch
      %220 = sbr.rel (0) target = $region41
    $region40: #{tpu_custom_call.1} parent=1 // pred_region
      %221 = dma.done [#allocation4], 128
    $region41: #{tpu_custom_call.1} parent=1 // pred_fallthru
      _
    %222 = vsyncpa [#allocation3], 1
    %223 = vsyncpa [#allocation6], 1
    %224 = vsyncpa [#allocation4], 1

</llo_original>
